<compile_context>
chip_gen: v7x
topology: tpu7x:2x2x1
jax: 0.10.0
libtpu: 0.0.40
codegen_flags: <defaults>
</compile_context>

<pallas_src>
import jax
import jax.numpy as jnp
from jax.experimental import pallas as pl
from jax.experimental.pallas import tpu as pltpu

RPN_SIGMA = 3.0            # opt.rpn_sigma default in simple-faster-rcnn
LANES = 128
MAX_TILE_ROWS = 512        # 512 * 128 = 65536 anchors per grid step
VMEM_TILE_BUDGET = 6 * 1024 * 1024   # bytes per (single-buffered) input tile


def _rpn_loss_kernel(label_ref, slab_ref, out_ref):
    """Accumulates [sum smooth-L1, sum masked CE, count(label>=0)] into a
    lane-dense (1, 3, 8, 128) output block (reduced to scalars by the caller).

    label_ref: (TR, 128)      int32, {-1, 0, 1} (padding = -1)
    slab_ref : (8+C, TR, 128) f32,  [gt_loc(4) | pred_loc(4) | scores(C)]
    out_ref  : (1, 3, 8, 128) f32 partial sums for this parallel chunk
    """
    sigma2 = RPN_SIGMA * RPN_SIGMA
    t = pl.program_id(1)

    @pl.when(t == 0)
    def _init():
        out_ref[...] = jnp.zeros_like(out_ref)

    num_classes = slab_ref.shape[0] - 8
    tile_rows = label_ref.shape[0]

    label = label_ref[...]                               # (TR, 128)
    # One canonical mask: RPN labels are restricted to {-1, 0, 1}.
    valid_f = (label >= 0).astype(jnp.float32)           # normalizer mask
    pos_f = (label > 0).astype(jnp.float32)              # positives (loc loss)

    slab = slab_ref[...]                                 # (8+C, TR, 128)

    # ---------------- smooth-L1 localization loss ----------------
    d = slab[4:8] - slab[0:4]                            # pred - gt, (4, TR, 128)
    ad = jnp.abs(d)
    y = jnp.where(ad < (1.0 / sigma2),
                  (sigma2 / 2.0) * d * d,
                  ad - 0.5 / sigma2)                     # (4, TR, 128)
    # Sum the 4 coords first (leading-axis VPU adds), mask once:
    # pos * sum_c f(d_c) == sum_c f(pos * d_c) since f(0) == 0 exactly.
    loc_contrib = pos_f * jnp.sum(y, axis=0)             # (TR, 128)

    # ---------------- cross entropy, ignore_index = -1 ----------------
    if num_classes == 2:
        # -log_softmax(s)[label] == softplus(s_other - s_picked), stable form.
        s0 = slab[8]
        s1 = slab[9]
        is_fg = label == 1
        picked = jnp.where(is_fg, s1, s0)
        other = jnp.where(is_fg, s0, s1)
        delta = other - picked
        per_anchor = (jnp.maximum(delta, 0.0)
                      + jnp.log(1.0 + jnp.exp(-jnp.abs(delta))))
    else:
        scores = slab[8:]                                 # (C, TR, 128)
        m = jnp.max(scores, axis=0)                       # class axis leading -> VPU
        lse = m + jnp.log(jnp.sum(jnp.exp(scores - m[None]), axis=0))
        cls_iota = jax.lax.broadcasted_iota(jnp.int32, scores.shape, 0)
        picked = jnp.sum(jnp.where(cls_iota == label[None], scores, 0.0), axis=0)
        per_anchor = lse - picked
    ce_contrib = per_anchor * valid_f                     # (TR, 128)

    def fold(x):
        # (TR, 128) -> (8, 128): sum the sublane slabs (pure VPU adds, no XLU).
        return x.reshape(tile_rows // 8, 8, LANES).sum(axis=0)

    out_ref[0, 0] += fold(loc_contrib)
    out_ref[0, 1] += fold(ce_contrib)
    out_ref[0, 2] += fold(valid_f)


@jax.jit
def rpn_loss(gt_rpn_loc, gt_rpn_label, rpn_locs, rpn_scores):
    """Mirrors RPNLoss.forward: uses batch element 0 of rpn_locs / rpn_scores."""
    pred_loc = jnp.asarray(rpn_locs, jnp.float32)[0]      # (N, 4)
    score = jnp.asarray(rpn_scores, jnp.float32)[0]       # (N, C)
    gt_loc = jnp.asarray(gt_rpn_loc, jnp.float32)         # (N, 4)
    label = jnp.asarray(gt_rpn_label, jnp.int32)          # (N,)

    n = label.shape[0]
    c = score.shape[1]

    # ---- static tiling decisions (shapes are static under jit) ----
    rows_needed = pl.cdiv(n, LANES)
    # Cap the tile so one input step (slab + labels) stays under the budget;
    # double-buffered that is < ~12 MiB, safely inside v5e's 16 MiB scoped VMEM
    # default (v6e/v7x default to 32 MiB scoped).
    bytes_per_row = (8 + c + 1) * LANES * 4
    budget_rows = max(8, (VMEM_TILE_BUDGET // bytes_per_row) // 8 * 8)
    tile_rows = min(MAX_TILE_ROWS, budget_rows,
                    max(8, ((rows_needed + 7) // 8) * 8))
    total_tiles = pl.cdiv(rows_needed, tile_rows)
    num_par = 2 if total_tiles >= 2 else 1     # v7x: one chunk per TensorCore
    tiles_per_par = pl.cdiv(total_tiles, num_par)
    rows_pad = num_par * tiles_per_par * tile_rows
    n_pad = rows_pad * LANES
    pad = n_pad - n

    # ---- anchors-last, lane+sublane dense re-layout ----
    # Padded anchors get label = -1 -> fully masked out of both losses.
    label_p = jnp.pad(label, (0, pad), constant_values=-1).reshape(rows_pad, LANES)
    # Single fused float slab -> one transpose, one DMA stream per step.
    # TODO(synk): produce locs/scores in this anchors-last layout upstream so
    # the (jit-fused) pad/transpose/reshape disappears entirely.
    slab = jnp.concatenate([gt_loc, pred_loc, score], axis=1)          # (N, 8+C)
    slab_p = jnp.pad(slab, ((0, pad), (0, 0))).T.reshape(8 + c, rows_pad, LANES)

    partials = pl.pallas_call(
        _rpn_loss_kernel,
        out_shape=jax.ShapeDtypeStruct((num_par, 3, 8, LANES), jnp.float32),
        grid_spec=pltpu.PrefetchScalarGridSpec(
            num_scalar_prefetch=0,
            grid=(num_par, tiles_per_par),
            in_specs=[
                pl.BlockSpec((tile_rows, LANES),
                             lambda p, t: (p * tiles_per_par + t, 0)),
                pl.BlockSpec((8 + c, tile_rows, LANES),
                             lambda p, t: (0, p * tiles_per_par + t, 0)),
            ],
            # Lane-dense partial-sum output, one block per parallel chunk;
            # resident (accumulated) across the "arbitrary" tile axis.
            out_specs=pl.BlockSpec((1, 3, 8, LANES),
                                   lambda p, t: (p, 0, 0, 0)),
        ),
        compiler_params=pltpu.CompilerParams(
            dimension_semantics=("parallel", "arbitrary")),
    )(label_p, slab_p)

    sums = jnp.sum(partials, axis=(0, 2, 3))   # (3,): [loc_sum, ce_sum, n_valid]
    denom = sums[2]   # NaN/Inf if no valid anchor exists (matches the reference)
    return sums[0] / denom, sums[1] / denom


def _rpn_loss_ref(gt_rpn_loc, gt_rpn_label, rpn_locs, rpn_scores):
    """Pure-JAX reference for correctness checking."""
    sigma2 = RPN_SIGMA * RPN_SIGMA
    pred_loc = jnp.asarray(rpn_locs[0], jnp.float32)
    score = jnp.asarray(rpn_scores[0], jnp.float32)
    gt_loc = jnp.asarray(gt_rpn_loc, jnp.float32)
    label = jnp.asarray(gt_rpn_label, jnp.int32)

    in_w = (label > 0).astype(jnp.float32)[:, None]
    diff = in_w * (pred_loc - gt_loc)
    ad = jnp.abs(diff)
    flag = (ad < 1.0 / sigma2).astype(jnp.float32)
    y = flag * (sigma2 / 2.0) * diff ** 2 + (1.0 - flag) * (ad - 0.5 / sigma2)
    loc_loss = jnp.sum(y) / jnp.sum((label >= 0).astype(jnp.float32))

    logp = jax.nn.log_softmax(score, axis=-1)
    picked = jnp.take_along_axis(logp, jnp.clip(label, 0)[:, None], axis=-1)[:, 0]
    valid = (label != -1).astype(jnp.float32)
    cls_loss = jnp.sum(-picked * valid) / jnp.sum(valid)
    return loc_loss, cls_loss


if __name__ == "__main__":
    N, C = 256, 2  # anchors, classes (bg/fg)
    key = jax.random.PRNGKey(0)
    k1, k2, k3, k4 = jax.random.split(key, 4)

    gt_rpn_loc = jax.random.normal(k1, (N, 4), dtype=jnp.float32)
    gt_rpn_label = jax.random.randint(k2, (N,), -1, 2, dtype=jnp.int32)  # {-1,0,1}
    rpn_locs = jax.random.normal(k3, (1, N, 4), dtype=jnp.float32)
    rpn_scores = jax.random.normal(k4, (1, N, C), dtype=jnp.float32)

    loc_loss, cls_loss = jax.block_until_ready(
        rpn_loss(gt_rpn_loc, gt_rpn_label, rpn_locs, rpn_scores))

    ref_loc, ref_cls = _rpn_loss_ref(gt_rpn_loc, gt_rpn_label, rpn_locs, rpn_scores)
    assert jnp.allclose(loc_loss, ref_loc, rtol=1e-5, atol=1e-5), (loc_loss, ref_loc)
    assert jnp.allclose(cls_loss, ref_cls, rtol=1e-5, atol=1e-5), (cls_loss, ref_cls)

    print("KERNEL_OK")
</pallas_src>

<mosaic_0001>
module attributes {stable_mosaic.version = 11 : i64} {
  func.func @_rpn_loss_kernel(%arg0: i32, %arg1: i32, %arg2: memref<8x128xi32, #tpu.memory_space<vmem>>, %arg3: memref<10x8x128xf32, #tpu.memory_space<vmem>>, %arg4: memref<1x3x8x128xf32, #tpu.memory_space<vmem>>) attributes {dimension_semantics = [#tpu.dimension_semantics<parallel>, #tpu.dimension_semantics<arbitrary>], iteration_bounds = array<i64: 1, 1>, scalar_prefetch = 0 : i64, scratch_operands = 0 : i64, tpu.core_type = #tpu.core_type<tc>, window_params = [{transform_indices = @transform_0, window_bounds = array<i64: 8, 128>}, {transform_indices = @transform_1, window_bounds = array<i64: 10, 8, 128>}, {transform_indices = @transform_2, window_bounds = array<i64: 1, 3, 8, 128>}]} {
    %c0_i32 = arith.constant 0 : i32
    %0 = arith.cmpi eq, %arg1, %c0_i32 : i32
    %1 = arith.extui %0 : i1 to i32
    %c0_i32_0 = arith.constant 0 : i32
    %2 = arith.cmpi ne, %1, %c0_i32_0 : i32
    scf.if %2 {
      %cst_38 = arith.constant 0.000000e+00 : f32
      %71 = vector.broadcast %cst_38 : f32 to vector<1x3x8x128xf32>
      %c0_39 = arith.constant 0 : index
      %c0_40 = arith.constant 0 : index
      %c0_41 = arith.constant 0 : index
      %c0_42 = arith.constant 0 : index
      %72 = vector.load %arg4[%c0_39, %c0_40, %c0_41, %c0_42] : memref<1x3x8x128xf32, #tpu.memory_space<vmem>>, vector<1x3x8x128xf32>
      tpu.vector_store %arg4[%c0_39, %c0_40, %c0_41, %c0_42], %71 {strides = array<i32>} : memref<1x3x8x128xf32, #tpu.memory_space<vmem>>, vector<1x3x8x128xf32>,
    } else {
    }
    %c0 = arith.constant 0 : index
    %c0_1 = arith.constant 0 : index
    %3 = vector.load %arg2[%c0, %c0_1] : memref<8x128xi32, #tpu.memory_space<vmem>>, vector<8x128xi32>
    %c0_i32_2 = arith.constant 0 : i32
    %4 = vector.broadcast %c0_i32_2 : i32 to vector<8x128xi32>
    %5 = arith.cmpi sge, %3, %4 : vector<8x128xi32>
    %6 = arith.extui %5 : vector<8x128xi1> to vector<8x128xi32>
    %7 = arith.sitofp %6 : vector<8x128xi32> to vector<8x128xf32>
    %c0_i32_3 = arith.constant 0 : i32
    %8 = vector.broadcast %c0_i32_3 : i32 to vector<8x128xi32>
    %9 = arith.cmpi sgt, %3, %8 : vector<8x128xi32>
    %10 = arith.extui %9 : vector<8x128xi1> to vector<8x128xi32>
    %11 = arith.sitofp %10 : vector<8x128xi32> to vector<8x128xf32>
    %c0_4 = arith.constant 0 : index
    %c0_5 = arith.constant 0 : index
    %c0_6 = arith.constant 0 : index
    %12 = vector.load %arg3[%c0_4, %c0_5, %c0_6] : memref<10x8x128xf32, #tpu.memory_space<vmem>>, vector<10x8x128xf32>
    %13 = vector.extract_strided_slice %12 {offsets = [4, 0, 0], sizes = [4, 8, 128], strides = [1, 1, 1]} : vector<10x8x128xf32> to vector<4x8x128xf32>
    %14 = vector.extract_strided_slice %12 {offsets = [0, 0, 0], sizes = [4, 8, 128], strides = [1, 1, 1]} : vector<10x8x128xf32> to vector<4x8x128xf32>
    %15 = arith.subf %13, %14 : vector<4x8x128xf32>
    %16 = math.absf %15 : vector<4x8x128xf32>
    %cst = arith.constant 0.111111112 : f32
    %17 = vector.broadcast %cst : f32 to vector<4x8x128xf32>
    %18 = arith.cmpf olt, %16, %17 : vector<4x8x128xf32>
    %cst_7 = arith.constant 4.500000e+00 : f32
    %19 = vector.broadcast %cst_7 : f32 to vector<4x8x128xf32>
    %20 = arith.mulf %19, %15 : vector<4x8x128xf32>
    %21 = arith.mulf %20, %15 : vector<4x8x128xf32>
    %cst_8 = arith.constant 0.055555556 : f32
    %22 = vector.broadcast %cst_8 : f32 to vector<4x8x128xf32>
    %23 = arith.subf %16, %22 : vector<4x8x128xf32>
    %24 = arith.select %18, %21, %23 : vector<4x8x128xi1>, vector<4x8x128xf32>
    %cst_9 = arith.constant dense<0.000000e+00> : vector<8x128xf32>
    %25 = vector.multi_reduction <add>, %24, %cst_9 [0] : vector<4x8x128xf32> to vector<8x128xf32>
    %26 = arith.mulf %11, %25 : vector<8x128xf32>
    %27 = vector.extract_strided_slice %12 {offsets = [8, 0, 0], sizes = [1, 8, 128], strides = [1, 1, 1]} : vector<10x8x128xf32> to vector<1x8x128xf32>
    %28 = vector.shape_cast %27 : vector<1x8x128xf32> to vector<8x128xf32>
    %29 = vector.extract_strided_slice %12 {offsets = [9, 0, 0], sizes = [1, 8, 128], strides = [1, 1, 1]} : vector<10x8x128xf32> to vector<1x8x128xf32>
    %30 = vector.shape_cast %29 : vector<1x8x128xf32> to vector<8x128xf32>
    %c1_i32 = arith.constant 1 : i32
    %31 = vector.broadcast %c1_i32 : i32 to vector<8x128xi32>
    %32 = arith.cmpi eq, %3, %31 : vector<8x128xi32>
    %33 = arith.select %32, %30, %28 : vector<8x128xi1>, vector<8x128xf32>
    %34 = arith.select %32, %28, %30 : vector<8x128xi1>, vector<8x128xf32>
    %35 = arith.subf %34, %33 : vector<8x128xf32>
    %cst_10 = arith.constant 0.000000e+00 : f32
    %36 = vector.broadcast %cst_10 : f32 to vector<8x128xf32>
    %37 = arith.maximumf %35, %36 : vector<8x128xf32>
    %38 = math.absf %35 : vector<8x128xf32>
    %cst_11 = arith.constant 0.000000e+00 : f32
    %39 = vector.broadcast %cst_11 : f32 to vector<8x128xf32>
    %40 = arith.subf %39, %38 : vector<8x128xf32>
    %41 = math.exp %40 : vector<8x128xf32>
    %cst_12 = arith.constant 1.000000e+00 : f32
    %42 = vector.broadcast %cst_12 : f32 to vector<8x128xf32>
    %43 = arith.addf %42, %41 : vector<8x128xf32>
    %44 = math.log %43 : vector<8x128xf32>
    %45 = arith.addf %37, %44 : vector<8x128xf32>
    %46 = arith.mulf %45, %7 : vector<8x128xf32>
    %c0_13 = arith.constant 0 : index
    %c0_14 = arith.constant 0 : index
    %c0_15 = arith.constant 0 : index
    %c0_16 = arith.constant 0 : index
    %47 = vector.load %arg4[%c0_13, %c0_14, %c0_15, %c0_16] : memref<1x3x8x128xf32, #tpu.memory_space<vmem>>, vector<1x1x8x128xf32>
    %48 = vector.shape_cast %47 : vector<1x1x8x128xf32> to vector<8x128xf32>
    %49 = vector.shape_cast %26 : vector<8x128xf32> to vector<1x8x128xf32>
    %cst_17 = arith.constant dense<0.000000e+00> : vector<8x128xf32>
    %50 = vector.multi_reduction <add>, %49, %cst_17 [0] : vector<1x8x128xf32> to vector<8x128xf32>
    %51 = arith.addf %48, %50 : vector<8x128xf32>
    %c0_18 = arith.constant 0 : index
    %c0_19 = arith.constant 0 : index
    %c0_20 = arith.constant 0 : index
    %c0_21 = arith.constant 0 : index
    %52 = vector.load %arg4[%c0_18, %c0_19, %c0_20, %c0_21] : memref<1x3x8x128xf32, #tpu.memory_space<vmem>>, vector<1x1x8x128xf32>
    %53 = vector.shape_cast %52 : vector<1x1x8x128xf32> to vector<8x128xf32>
    %54 = vector.shape_cast %51 : vector<8x128xf32> to vector<1x1x8x128xf32>
    tpu.vector_store %arg4[%c0_18, %c0_19, %c0_20, %c0_21], %54 {strides = array<i32>} : memref<1x3x8x128xf32, #tpu.memory_space<vmem>>, vector<1x1x8x128xf32>,
    %c0_22 = arith.constant 0 : index
    %c1 = arith.constant 1 : index
    %c0_23 = arith.constant 0 : index
    %c0_24 = arith.constant 0 : index
    %55 = vector.load %arg4[%c0_22, %c1, %c0_23, %c0_24] : memref<1x3x8x128xf32, #tpu.memory_space<vmem>>, vector<1x1x8x128xf32>
    %56 = vector.shape_cast %55 : vector<1x1x8x128xf32> to vector<8x128xf32>
    %57 = vector.shape_cast %46 : vector<8x128xf32> to vector<1x8x128xf32>
    %cst_25 = arith.constant dense<0.000000e+00> : vector<8x128xf32>
    %58 = vector.multi_reduction <add>, %57, %cst_25 [0] : vector<1x8x128xf32> to vector<8x128xf32>
    %59 = arith.addf %56, %58 : vector<8x128xf32>
    %c0_26 = arith.constant 0 : index
    %c1_27 = arith.constant 1 : index
    %c0_28 = arith.constant 0 : index
    %c0_29 = arith.constant 0 : index
    %60 = vector.load %arg4[%c0_26, %c1_27, %c0_28, %c0_29] : memref<1x3x8x128xf32, #tpu.memory_space<vmem>>, vector<1x1x8x128xf32>
    %61 = vector.shape_cast %60 : vector<1x1x8x128xf32> to vector<8x128xf32>
    %62 = vector.shape_cast %59 : vector<8x128xf32> to vector<1x1x8x128xf32>
    tpu.vector_store %arg4[%c0_26, %c1_27, %c0_28, %c0_29], %62 {strides = array<i32>} : memref<1x3x8x128xf32, #tpu.memory_space<vmem>>, vector<1x1x8x128xf32>,
    %c0_30 = arith.constant 0 : index
    %c2 = arith.constant 2 : index
    %c0_31 = arith.constant 0 : index
    %c0_32 = arith.constant 0 : index
    %63 = vector.load %arg4[%c0_30, %c2, %c0_31, %c0_32] : memref<1x3x8x128xf32, #tpu.memory_space<vmem>>, vector<1x1x8x128xf32>
    %64 = vector.shape_cast %63 : vector<1x1x8x128xf32> to vector<8x128xf32>
    %65 = vector.shape_cast %7 : vector<8x128xf32> to vector<1x8x128xf32>
    %cst_33 = arith.constant dense<0.000000e+00> : vector<8x128xf32>
    %66 = vector.multi_reduction <add>, %65, %cst_33 [0] : vector<1x8x128xf32> to vector<8x128xf32>
    %67 = arith.addf %64, %66 : vector<8x128xf32>
    %c0_34 = arith.constant 0 : index
    %c2_35 = arith.constant 2 : index
    %c0_36 = arith.constant 0 : index
    %c0_37 = arith.constant 0 : index
    %68 = vector.load %arg4[%c0_34, %c2_35, %c0_36, %c0_37] : memref<1x3x8x128xf32, #tpu.memory_space<vmem>>, vector<1x1x8x128xf32>
    %69 = vector.shape_cast %68 : vector<1x1x8x128xf32> to vector<8x128xf32>
    %70 = vector.shape_cast %67 : vector<8x128xf32> to vector<1x1x8x128xf32>
    tpu.vector_store %arg4[%c0_34, %c2_35, %c0_36, %c0_37], %70 {strides = array<i32>} : memref<1x3x8x128xf32, #tpu.memory_space<vmem>>, vector<1x1x8x128xf32>,
    return
  }
  func.func @transform_0(%arg0: i32, %arg1: i32) -> (i32, i32) {
    %c1_i32 = arith.constant 1 : i32
    %0 = arith.muli %arg0, %c1_i32 : i32
    %1 = arith.addi %0, %arg1 : i32
    %c0_i32 = arith.constant 0 : i32
    %c0_i32_0 = arith.constant 0 : i32
    return %1, %c0_i32 : i32, i32
  }
  func.func @transform_1(%arg0: i32, %arg1: i32) -> (i32, i32, i32) {
    %c1_i32 = arith.constant 1 : i32
    %0 = arith.muli %arg0, %c1_i32 : i32
    %1 = arith.addi %0, %arg1 : i32
    %c0_i32 = arith.constant 0 : i32
    %c0_i32_0 = arith.constant 0 : i32
    %c0_i32_1 = arith.constant 0 : i32
    return %c0_i32, %1, %c0_i32_0 : i32, i32, i32
  }
  func.func @transform_2(%arg0: i32, %arg1: i32) -> (i32, i32, i32, i32) {
    %c0_i32 = arith.constant 0 : i32
    %c0_i32_0 = arith.constant 0 : i32
    %c0_i32_1 = arith.constant 0 : i32
    %c0_i32_2 = arith.constant 0 : i32
    return %arg0, %c0_i32, %c0_i32_0, %c0_i32_1 : i32, i32, i32, i32
  }
}

</mosaic_0001>

<llo_original>
// kernel: rpn_loss.1
$region0: #{rpn_loss.1}
  #allocation0 [shape = 'u32[]', space=smem, size = 0x4, offset = 0x4, fixed_abs, tag = 'smem constant byte address 0x4 - core index']
  #allocation1 [shape = 'u32[144,128]{1,0:T(1,128)}', space=vmem, size = 0x12000, scoped, tag = 'internal scratch']
  %s0 = inlined_call_operand.vmem [shape: s32[8,128], index: 0, kind: input, shape index: {}]
  %s1 = inlined_call_operand.vmem [shape: f32[10,8,128], index: 1, kind: input, shape index: {}]
  %s2 = inlined_call_operand.vmem [shape: f32[1,3,8,128], index: 2, kind: output, shape index: {}]
  %s3 = sld [smem:[#allocation0]]
  $region22: #{rpn_loss.1} parent=0
    _
  %s5 = ssub.s32 1, %s3
  %s6 = scalar_select 0, %s5, %s3
  // Predicated region
  $region2: #{rpn_loss.1} parent=0 // pred_check
    _
  $region3: #{rpn_loss.1} parent=0 // pred_check_branch
    %8 = sbr.rel (0) target = $region5
  $region4: #{rpn_loss.1} parent=0 // pred_region
    %s9 = sadd.s32 0, 0
    %p10 = scmp.lt.s32.totalorder %s9, 0
    %s11 = scalar_select %p10, %s9, 0
    %s12 = smul.addr %s11, 8
    %s13 = scalar_lea.vmem %s0, %s12
    %s14 = sadd.s32 0, 0
  $region5: #{rpn_loss.1} parent=0 // pred_fallthru
    _
  // Predicated region
  $region6: #{rpn_loss.1} parent=0 // pred_check
    _
  $region7: #{rpn_loss.1} parent=0 // pred_check_branch
    %16 = sbr.rel (0) target = $region9
  $region8: #{rpn_loss.1} parent=0 // pred_region
    %s17 = sadd.s32 0, 0
    %p18 = scmp.lt.s32.totalorder %s17, 0
    %s19 = scalar_select %p18, %s17, 0
    %s20 = smul.addr %s19, 8
    %s21 = scalar_lea.vmem %s1, %s20
    %s22 = sadd.s32 0, 0
  $region9: #{rpn_loss.1} parent=0 // pred_fallthru
    _
  %s23 = sadd.s32 0, 0
  %p24 = scmp.lt.s32.totalorder %s23, 0
  %s25 = scalar_select %p24, %s23, 0
  %s26 = smul.addr %s25, 8
  %s27 = scalar_lea.vmem %s0, %s26
  %s28 = sadd.s32 0, 0
  %p29 = scmp.lt.s32.totalorder %s28, 0
  %s30 = scalar_select %p29, %s28, 0
  %s31 = smul.addr %s30, 8
  %s32 = scalar_lea.vmem %s1, %s31
  %s33 = sadd.s32 0, 0
  %p34 = scmp.lt.s32.totalorder %s33, 0
  %s35 = scalar_select %p34, %s33, 0
  %s36 = smul.addr %s35, 8
  %s37 = scalar_lea.vmem %s0, %s36
  %s38 = sadd.s32 0, 0
  %s39 = sadd.s32 0, 0
  %p40 = scmp.lt.s32.totalorder %s39, 0
  %s41 = scalar_select %p40, %s39, 0
  %s42 = smul.addr %s41, 8
  %s43 = scalar_lea.vmem %s1, %s42
  %s44 = sadd.s32 0, 0
  %p45 = scmp.eq.s32.totalorder 0, 0
  // Predicated region
  $region10: #{rpn_loss.1} parent=0 // pred_check
    %p46 = pneg %p45
  $region11: #{rpn_loss.1} parent=0 // pred_check_branch
    %48 = sbr.rel (%p46) target = $region13
  $region12: #{rpn_loss.1} parent=0 // pred_region
    %49 = vst [vmem:[%s2] sm:$0xff] 0.0
    %50 = vst [vmem:[%s2 + $0x8] sm:$0xff] 0.0
    %51 = vst [vmem:[%s2 + $0x10] sm:$0xff] 0.0
  $region13: #{rpn_loss.1} parent=0 // pred_fallthru
    _
  %v52 = vld [vmem:[%s37] sm:$0xff]
  %vm53 = vcmp.ge.s32.totalorder %v52, 0
  %v54 = vsel %vm53, 1, 0
  %v55 = vcvt.s32.f32 %v54
  %vm56 = vcmp.gt.s32.totalorder %v52, 0
  %v57 = vsel %vm56, 1, 0
  %v58 = vcvt.s32.f32 %v57
  %v59 = vld [vmem:[%s43] sm:$0xff]
  %v60 = vld [vmem:[%s43 + $0x8] sm:$0xff]
  %v61 = vld [vmem:[%s43 + $0x10] sm:$0xff]
  %v62 = vld [vmem:[%s43 + $0x18] sm:$0xff]
  %v63 = vld [vmem:[%s43 + $0x20] sm:$0xff]
  %v64 = vld [vmem:[%s43 + $0x28] sm:$0xff]
  %v65 = vld [vmem:[%s43 + $0x30] sm:$0xff]
  %v66 = vld [vmem:[%s43 + $0x38] sm:$0xff]
  %v67 = vld [vmem:[%s43 + $0x40] sm:$0xff]
  %v68 = vld [vmem:[%s43 + $0x48] sm:$0xff]
  %v69 = vsub.f32 %v63, %v59
  %v70 = vsub.f32 %v64, %v60
  %v71 = vsub.f32 %v65, %v61
  %v72 = vsub.f32 %v66, %v62
  %v73 = vand.u32 2147483647, %v69
  %v74 = vand.u32 2147483647, %v70
  %v75 = vand.u32 2147483647, %v71
  %v76 = vand.u32 2147483647, %v72
  %vm77 = vcmp.lt.f32.partialorder %v73, 0.11111111
  %vm78 = vcmp.lt.f32.partialorder %v74, 0.11111111
  %vm79 = vcmp.lt.f32.partialorder %v75, 0.11111111
  %vm80 = vcmp.lt.f32.partialorder %v76, 0.11111111
  %v81 = vmul.f32 %v69, 4.5
  %v82 = vmul.f32 %v70, 4.5
  %v83 = vmul.f32 %v71, 4.5
  %v84 = vmul.f32 %v72, 4.5
  %v85 = vmul.f32 %v81, %v69
  %v86 = vmul.f32 %v82, %v70
  %v87 = vmul.f32 %v83, %v71
  %v88 = vmul.f32 %v84, %v72
  %v89 = vsub.f32 %v73, 0.055555556
  %v90 = vsub.f32 %v74, 0.055555556
  %v91 = vsub.f32 %v75, 0.055555556
  %v92 = vsub.f32 %v76, 0.055555556
  %v93 = vsel %vm77, %v85, %v89
  %v94 = vsel %vm78, %v86, %v90
  %v95 = vsel %vm79, %v87, %v91
  %v96 = vsel %vm80, %v88, %v92
  %v97 = vadd.f32 %v93, %v94
  %v98 = vadd.f32 %v97, %v95
  %v99 = vadd.f32 %v98, %v96
  %v100 = vmul.f32 %v58, %v99
  %vm101 = vcmp.eq.s32.totalorder %v52, 1
  %v102 = vsel %vm101, %v68, %v67
  %v103 = vsel %vm101, %v67, %v68
  %v104 = vsub.f32 %v103, %v102
  %v105 = vmax.f32 %v104, 0.0
  %v106 = vand.u32 2147483647, %v104
  %v107 = vsub.f32 0.0, %v106
  %v108 = vmul.f32 %v107, 1.442695
  %v109 = vpow.pop %v108
  %v110 = vadd.f32 %v109, 1.0
  %v111 = vlog2.pop %v110
  %v112 = vmul.f32 %v111, 0.6931472
  %v113 = vadd.f32 %v105, %v112
  %v114 = vmul.f32 %v113, %v55
  %v115 = vld [vmem:[%s2] sm:$0xff]
  %v116 = vadd.f32 %v100, 0.0
  %v117 = vadd.f32 %v115, %v116
  %118 = vst [vmem:[%s2] sm:$0xff] %v117
  %s119 = scalar_lea.vmem %s2, 8
  %v120 = vld [vmem:[%s119] sm:$0xff]
  %v121 = vadd.f32 %v114, 0.0
  %v122 = vadd.f32 %v120, %v121
  %123 = vst [vmem:[%s119] sm:$0xff] %v122
  %s124 = scalar_lea.vmem %s2, 16
  %v125 = vld [vmem:[%s124] sm:$0xff]
  %v126 = vadd.f32 %v55, 0.0
  %v127 = vadd.f32 %v125, %v126
  %128 = vst [vmem:[%s124] sm:$0xff] %v127
  // Predicated region
  $region14: #{rpn_loss.1} parent=0 // pred_check
    _
  $region15: #{rpn_loss.1} parent=0 // pred_check_branch
    %130 = sbr.rel (0) target = $region17
  $region16: #{rpn_loss.1} parent=0 // pred_region
    _
  $region17: #{rpn_loss.1} parent=0 // pred_fallthru
    _
  // Predicated region
  $region18: #{rpn_loss.1} parent=0 // pred_check
    _
  $region19: #{rpn_loss.1} parent=0 // pred_check_branch
    %132 = sbr.rel (0) target = $region21
  $region20: #{rpn_loss.1} parent=0 // pred_region
    _
  $region21: #{rpn_loss.1} parent=0 // pred_fallthru
    _

</llo_original>
